<compile_context>
chip_gen: v6e
topology: v6e:2x2x1
jax: 0.10.0
libtpu: 0.0.40
codegen_flags: <defaults>
</compile_context>

<pallas_src>
import functools
import math

import jax
import jax.numpy as jnp
import numpy as np
from jax.experimental import pallas as pl
from jax.experimental.pallas import tpu as pltpu

G = 8          # number of param groups across all optimizers (example size)
LANES = 128    # lane-dense packing width (one full lane row)
OUT_ROWS = 8   # full (8,128) output tile -> single unmasked store


def _sched_kernel(step_ref, pack_ref, out_ref, *, num_groups,
                  wu_steps, inv_wu, dec_steps, pi_over_dec,
                  wu_start, lr_end, wd_start, wd_end):
    # ---- runtime scalar (SMEM, int32 -> f32) ----
    step = step_ref[0].astype(jnp.float32)

    # ---- lane-dense per-group vectors ----
    lr_max = pack_ref[0:1, :]       # (1, LANES)
    wd_in = pack_ref[1:2, :]        # (1, LANES)

    lane = jax.lax.broadcasted_iota(jnp.int32, (1, LANES), 1)
    valid = lane < num_groups                          # real param groups
    wd_mask = jnp.logical_and(valid, wd_in != 0.0)     # groups whose wd is updated

    # ---- warmup branch: lr = wu_start + alpha * (lr_max - wu_start) ----
    alpha = step * inv_wu
    lr_wu = wu_start + alpha * (lr_max - wu_start)

    # ---- cosine branch (one EUP cos on a full vreg) ----
    dec_step = step - wu_steps
    arg = pi_over_dec * dec_step
    cos_vec = jnp.cos(jnp.full((1, LANES), arg, dtype=jnp.float32))
    cf = 0.5 * (1.0 + cos_vec)                          # (1, LANES)
    lr_cos = lr_end + (lr_max - lr_end) * cf
    wd_cos = wd_end + (wd_start - wd_end) * cf

    in_warmup = step <= wu_steps
    past_dec = dec_step >= dec_steps

    # learning rates
    lr_decay = jnp.where(past_dec, jnp.full((1, LANES), lr_end, jnp.float32), lr_cos)
    lr_new = jnp.where(in_warmup, lr_wu, lr_decay)
    lr_new = jnp.where(valid, lr_new, 0.0)              # zero padded lanes

    # weight decays (only groups with wd != 0 updated; warmup leaves wd untouched)
    wd_after = jnp.where(past_dec, jnp.full((1, LANES), wd_end, jnp.float32), wd_cos)
    wd_decay = jnp.where(wd_mask, wd_after, wd_in)
    wd_new = jnp.where(in_warmup, wd_in, wd_decay)
    wd_new = jnp.where(valid, wd_new, 0.0)              # zero padded lanes

    # logged scalars, broadcast across their output rows.
    # NOTE: in the past-decay branch the module returns lr_end directly; max()
    # over lanes equals lr_end as long as lr_end >= 0 (asserted host-side).
    lr_curr_row = jnp.broadcast_to(
        jnp.maximum(jnp.max(lr_new, axis=-1, keepdims=True), 0.0), (1, LANES))
    wd_curr_row = jnp.where(
        in_warmup, jnp.full((1, LANES), wd_start, jnp.float32), wd_after)

    # single unmasked full-tile store
    slab = jnp.concatenate(
        [lr_new, wd_new, lr_curr_row, wd_curr_row,
         jnp.zeros((OUT_ROWS - 4, LANES), jnp.float32)], axis=0)
    out_ref[...] = slab


def pack_groups(lr_max, weight_decay):
    """Build the lane-dense (2, LANES) input slab ONCE (host-side, numpy)."""
    lr_max = np.asarray(lr_max, np.float32).reshape(-1)
    wd = np.asarray(weight_decay, np.float32).reshape(-1)
    g = int(lr_max.shape[0])
    assert g == wd.shape[0]
    assert g <= LANES, "more param groups than lanes; extend packing"
    packed = np.zeros((2, LANES), np.float32)
    packed[0, :g] = lr_max
    packed[1, :g] = wd
    return jnp.asarray(packed), g


@functools.lru_cache(maxsize=None)
def _build_scheduler(num_groups, wu_steps, dec_steps, wu_start, lr_end,
                     wd_start, wd_end):
    assert lr_end >= 0.0, "lr_end must be >= 0 for lr_curr = max() to match module"
    # host-side reciprocals of static hyperparameters (guard /0; if wu_steps==0
    # the warmup branch is never taken for step>=1, matching the module).
    inv_wu = (1.0 / float(wu_steps)) if wu_steps else 0.0
    pi_over_dec = (math.pi / float(dec_steps)) if dec_steps else 0.0

    kernel = functools.partial(
        _sched_kernel,
        num_groups=int(num_groups),
        wu_steps=float(wu_steps), inv_wu=float(inv_wu),
        dec_steps=float(dec_steps), pi_over_dec=float(pi_over_dec),
        wu_start=float(wu_start), lr_end=float(lr_end),
        wd_start=float(wd_start), wd_end=float(wd_end))

    call = pl.pallas_call(
        kernel,
        out_shape=jax.ShapeDtypeStruct((OUT_ROWS, LANES), jnp.float32),
        in_specs=[
            pl.BlockSpec(memory_space=pltpu.MemorySpace.SMEM),   # step (int32)
            pl.BlockSpec(memory_space=pltpu.MemorySpace.VMEM),   # packed lr/wd slab
        ],
        out_specs=pl.BlockSpec(memory_space=pltpu.MemorySpace.VMEM),
        cost_estimate=pl.CostEstimate(
            flops=32 * LANES,
            transcendentals=LANES,
            bytes_accessed=(2 * LANES + OUT_ROWS * LANES) * 4 + 4),
    )
    return jax.jit(call)


def opt_scheduler_step(step, packed, num_groups, *,
                       wu_steps, dec_steps, wu_start, lr_end, wd_start, wd_end):
    """Returns (new_lr (g,), new_wd (g,), lr_curr scalar, wd_curr scalar)."""
    sched = _build_scheduler(num_groups, float(wu_steps), float(dec_steps),
                             float(wu_start), float(lr_end),
                             float(wd_start), float(wd_end))
    step_arr = jnp.asarray([step], dtype=jnp.int32)
    out = sched(step_arr, packed)
    g = num_groups
    lr_new = out[0, :g]
    wd_new = out[1, :g]
    lr_curr = out[2, 0]
    wd_curr = out[3, 0]
    return lr_new, wd_new, lr_curr, wd_curr


# ---------------- pure-Python reference (mirrors the PyTorch module) ----------------
def _ref(step, lr_max, wd_in, wu_steps, dec_steps, wu_start, lr_end, wd_start, wd_end):
    lr_max = np.asarray(lr_max, np.float32)
    wd_in = np.asarray(wd_in, np.float32)
    if step <= wu_steps:
        alpha = step / float(wu_steps)
        lr = wu_start + alpha * (lr_max - wu_start)
        wd = wd_in.copy()
        lr_curr = max(0.0, float(lr.max()))
        wd_curr = wd_start
    else:
        dec_step = step - wu_steps
        if dec_step >= dec_steps:
            lr = np.full_like(lr_max, lr_end)
            wd = np.where(wd_in != 0, wd_end, wd_in)
            lr_curr, wd_curr = lr_end, wd_end
        else:
            cf = 0.5 * (1 + math.cos(math.pi * dec_step / float(dec_steps)))
            lr = lr_end + (lr_max - lr_end) * cf
            new_wd = wd_end + (wd_start - wd_end) * cf
            wd = np.where(wd_in != 0, new_wd, wd_in)
            lr_curr = max(0.0, float(lr.max()))
            wd_curr = new_wd
    return lr, wd, np.float32(lr_curr), np.float32(wd_curr)


if __name__ == "__main__":
    key = jax.random.PRNGKey(0)
    k1, _ = jax.random.split(key)

    # deterministic synthetic "param groups": per-group lr_max and weight_decay
    lr_max = (1e-3 * (1.0 + jax.random.uniform(k1, (G,)))).astype(jnp.float32)
    wd_mask_np = np.array([1, 1, 0, 1, 0, 1, 1, 0], dtype=np.float32)  # some groups wd=0
    weight_decay = jnp.asarray(0.04 * wd_mask_np, dtype=jnp.float32)

    # scheduler hyperparameters (as OptScheduler.__init__ would compute them)
    hp = dict(wu_steps=10.0, dec_steps=100.0, wu_start=1e-6,
              lr_end=1e-5, wd_start=0.04, wd_end=0.4)

    # pack the per-group inputs ONCE (not per step)
    packed, g = pack_groups(np.asarray(lr_max), np.asarray(weight_decay))

    ok = True
    for step in (3, 10, 50, 110, 200):  # warmup / boundary / cosine / past-decay
        out = opt_scheduler_step(step, packed, g, **hp)
        out = jax.block_until_ready(out)
        lr_k, wd_k, lrc_k, wdc_k = (np.asarray(o) for o in out)
        lr_r, wd_r, lrc_r, wdc_r = _ref(step, lr_max, weight_decay, **hp)
        ok &= np.allclose(lr_k, lr_r, rtol=1e-5, atol=1e-7)
        ok &= np.allclose(wd_k, wd_r, rtol=1e-5, atol=1e-7)
        ok &= np.allclose(lrc_k, lrc_r, rtol=1e-5, atol=1e-7)
        ok &= np.allclose(wdc_k, wdc_r, rtol=1e-5, atol=1e-7)

    # TODO(synk): host-side effects of the module (mutating optimizer param_groups,
    # incrementing self.curr_step, exp.log_metric logging) have no kernel equivalent;
    # the kernel returns the new lr/wd vectors and the logged scalars instead.
    if ok:
        print("KERNEL_OK")
    else:
        print("MISMATCH")
</pallas_src>

<mosaic_0001>
module attributes {stable_mosaic.version = 11 : i64} {
  func.func @_sched_kernel(%arg0: memref<1xi32, #tpu.memory_space<smem>>, %arg1: memref<2x128xf32, #tpu.memory_space<vmem>>, %arg2: memref<8x128xf32, #tpu.memory_space<vmem>>) attributes {dimension_semantics = [], scalar_prefetch = 0 : i64, scratch_operands = 0 : i64, tpu.core_type = #tpu.core_type<tc>} {
    %c0 = arith.constant 0 : index
    %0 = memref.load %arg0[%c0] : memref<1xi32, #tpu.memory_space<smem>>
    %1 = arith.sitofp %0 : i32 to f32
    %c0_0 = arith.constant 0 : index
    %c0_1 = arith.constant 0 : index
    %2 = vector.load %arg1[%c0_0, %c0_1] : memref<2x128xf32, #tpu.memory_space<vmem>>, vector<1x128xf32>
    %c1 = arith.constant 1 : index
    %c0_2 = arith.constant 0 : index
    %3 = vector.load %arg1[%c1, %c0_2] : memref<2x128xf32, #tpu.memory_space<vmem>>, vector<1x128xf32>
    %4 = tpu.iota {dimensions = array<i32: 1>} : vector<1x128xi32>
    %c8_i32 = arith.constant 8 : i32
    %5 = vector.broadcast %c8_i32 : i32 to vector<1x128xi32>
    %6 = arith.cmpi slt, %4, %5 : vector<1x128xi32>
    %cst = arith.constant 0.000000e+00 : f32
    %7 = vector.broadcast %cst : f32 to vector<1x128xf32>
    %8 = arith.cmpf one, %3, %7 : vector<1x128xf32>
    %9 = arith.andi %6, %8 : vector<1x128xi1>
    %cst_3 = arith.constant 1.000000e-01 : f32
    %10 = arith.mulf %1, %cst_3 : f32
    %cst_4 = arith.constant 9.99999997E-7 : f32
    %11 = vector.broadcast %cst_4 : f32 to vector<1x128xf32>
    %12 = arith.subf %2, %11 : vector<1x128xf32>
    %13 = vector.broadcast %10 : f32 to vector<1x128xf32>
    %14 = arith.mulf %13, %12 : vector<1x128xf32>
    %cst_5 = arith.constant 9.99999997E-7 : f32
    %15 = vector.broadcast %cst_5 : f32 to vector<1x128xf32>
    %16 = arith.addf %15, %14 : vector<1x128xf32>
    %cst_6 = arith.constant 1.000000e+01 : f32
    %17 = arith.subf %1, %cst_6 : f32
    %cst_7 = arith.constant 0.0314159282 : f32
    %18 = arith.mulf %cst_7, %17 : f32
    %19 = vector.broadcast %18 : f32 to vector<1x128xf32>
    %20 = math.cos %19 : vector<1x128xf32>
    %cst_8 = arith.constant 1.000000e+00 : f32
    %21 = vector.broadcast %cst_8 : f32 to vector<1x128xf32>
    %22 = arith.addf %21, %20 : vector<1x128xf32>
    %cst_9 = arith.constant 5.000000e-01 : f32
    %23 = vector.broadcast %cst_9 : f32 to vector<1x128xf32>
    %24 = arith.mulf %23, %22 : vector<1x128xf32>
    %cst_10 = arith.constant 9.99999974E-6 : f32
    %25 = vector.broadcast %cst_10 : f32 to vector<1x128xf32>
    %26 = arith.subf %2, %25 : vector<1x128xf32>
    %27 = arith.mulf %26, %24 : vector<1x128xf32>
    %cst_11 = arith.constant 9.99999974E-6 : f32
    %28 = vector.broadcast %cst_11 : f32 to vector<1x128xf32>
    %29 = arith.addf %28, %27 : vector<1x128xf32>
    %cst_12 = arith.constant -3.600000e-01 : f32
    %30 = vector.broadcast %cst_12 : f32 to vector<1x128xf32>
    %31 = arith.mulf %30, %24 : vector<1x128xf32>
    %cst_13 = arith.constant 4.000000e-01 : f32
    %32 = vector.broadcast %cst_13 : f32 to vector<1x128xf32>
    %33 = arith.addf %32, %31 : vector<1x128xf32>
    %cst_14 = arith.constant 1.000000e+01 : f32
    %34 = arith.cmpf ole, %1, %cst_14 : f32
    %cst_15 = arith.constant 1.000000e+02 : f32
    %35 = arith.cmpf oge, %17, %cst_15 : f32
    %cst_16 = arith.constant 9.99999974E-6 : f32
    %36 = vector.broadcast %cst_16 : f32 to vector<1x128xf32>
    %37 = arith.select %35, %36, %29 : vector<1x128xf32>
    %38 = arith.select %34, %16, %37 : vector<1x128xf32>
    %cst_17 = arith.constant 0.000000e+00 : f32
    %39 = vector.broadcast %cst_17 : f32 to vector<1x128xf32>
    %40 = arith.select %6, %38, %39 : vector<1x128xi1>, vector<1x128xf32>
    %cst_18 = arith.constant 4.000000e-01 : f32
    %41 = vector.broadcast %cst_18 : f32 to vector<1x128xf32>
    %42 = arith.select %35, %41, %33 : vector<1x128xf32>
    %43 = arith.select %9, %42, %3 : vector<1x128xi1>, vector<1x128xf32>
    %44 = arith.select %34, %3, %43 : vector<1x128xf32>
    %cst_19 = arith.constant 0.000000e+00 : f32
    %45 = vector.broadcast %cst_19 : f32 to vector<1x128xf32>
    %46 = arith.select %6, %44, %45 : vector<1x128xi1>, vector<1x128xf32>
    %cst_20 = arith.constant dense<0xFF800000> : vector<1xf32>
    %47 = vector.multi_reduction <maximumf>, %40, %cst_20 [1] : vector<1x128xf32> to vector<1xf32>
    %48 = vector.shape_cast %47 : vector<1xf32> to vector<1x1xf32>
    %cst_21 = arith.constant 0.000000e+00 : f32
    %49 = vector.broadcast %cst_21 : f32 to vector<1x1xf32>
    %50 = arith.maximumf %48, %49 : vector<1x1xf32>
    %51 = vector.shape_cast %50 : vector<1x1xf32> to vector<1x1xf32>
    %52 = vector.broadcast %51 : vector<1x1xf32> to vector<1x128xf32>
    %cst_22 = arith.constant 4.000000e-02 : f32
    %53 = vector.broadcast %cst_22 : f32 to vector<1x128xf32>
    %54 = arith.select %34, %53, %42 : vector<1x128xf32>
    %cst_23 = arith.constant 0.000000e+00 : f32
    %55 = vector.broadcast %cst_23 : f32 to vector<4x128xf32>
    %56 = tpu.concatenate %40, %46, %52, %54, %55 in 0 : vector<1x128xf32>, vector<1x128xf32>, vector<1x128xf32>, vector<1x128xf32>, vector<4x128xf32> -> vector<8x128xf32>
    %c0_24 = arith.constant 0 : index
    %c0_25 = arith.constant 0 : index
    %57 = vector.load %arg2[%c0_24, %c0_25] : memref<8x128xf32, #tpu.memory_space<vmem>>, vector<8x128xf32>
    tpu.vector_store %arg2[%c0_24, %c0_25], %56 {strides = array<i32>} : memref<8x128xf32, #tpu.memory_space<vmem>>, vector<8x128xf32>,
    return
  }
}

</mosaic_0001>

<llo_original>
// kernel: tpu_custom_call.1
$region0: #{tpu_custom_call.1}
  #allocation0 [shape = 'u32[]', space=smem, size = 0x4, offset = 0x4, fixed_abs, tag = 'smem constant byte address 0x4 - core index']
  #allocation1 [shape = 'u32[144,128]{1,0:T(1,128)}', space=vmem, size = 0x12000, scoped, tag = 'internal scratch']
  #allocation2 [shape = 's32[1]{0:T(128)S(6)}', space=smem, size = 0x200, scoped, tag = 'scoped memory for tpu_custom_call.1']
  %s0 = inlined_call_operand.<no memory space> [shape: s32[1], index: 0, kind: input, shape index: {}]
  %s1 = inlined_call_operand.vmem [shape: f32[2,128], index: 1, kind: input, shape index: {}]
  %s2 = inlined_call_operand.hbm [shape: f32[8,128], index: 2, kind: output, shape index: {}]
  %s3 = sld [smem:[#allocation0]]
  $region18: #{tpu_custom_call.1} parent=0
    _
  %s5 = ssub.s32 1, %s3
  %s6 = scalar_select 0, %s5, %s3
  %7 = sst [smem:[#allocation2]] %s0
  $region1: #{tpu_custom_call.1} parent=0
    #allocation3 [shape = 'u8[4096]{0}', space=vmem, size = 0x1000, scoped, tag = 'output window, operand 0, single buffered']
    #allocation4 [shape = 's32[1]{0}', space=sflag, size = 0x4, scoped, tag = 'scoped memory for tpu_custom_call.1']
    %8 = vsyncpa [#allocation4], 0
    // Predicated region
    $region2: #{tpu_custom_call.1} parent=1 // pred_check
      _
    $region3: #{tpu_custom_call.1} parent=1 // pred_check_branch
      %10 = sbr.rel (0) target = $region5
    $region4: #{tpu_custom_call.1} parent=1 // pred_region
      _
    $region5: #{tpu_custom_call.1} parent=1 // pred_fallthru
      _
    // Predicated region
    $region6: #{tpu_custom_call.1} parent=1 // pred_check
      _
    $region7: #{tpu_custom_call.1} parent=1 // pred_check_branch
      %12 = sbr.rel (0) target = $region9
    $region8: #{tpu_custom_call.1} parent=1 // pred_region
      _
    $region9: #{tpu_custom_call.1} parent=1 // pred_fallthru
      _
    %s13 = sld [smem:[#allocation2]]
    %s14 = scvt.s32.f32 %s13
    %v15 = vld [vmem:[%s1] sm:$0x1]
    %v16 = vld [vmem:[%s1 + $0x1] sm:$0x1]
    %v17 = vlaneseq
    %v18 = vand.u32 %v17, 127
    %vm19 = vcmp.lt.s32.totalorder %v18, 8
    %vm20 = vcmp.ne.f32.partialorder %v16, 0.0
    %vm21 = vmand %vm19, %vm20
    %s22 = smul.f32 %s14, 0.1
    %v23 = vsub.f32 %v15, 1e-06
    %v24 = vstv %s22
    %v25 = vmul.f32 %v24, %v23
    %v26 = vadd.f32 %v25, 1e-06
    %s27 = ssub.f32 %s14, 10.0
    %s28 = smul.f32 %s27, 0.03141593
    %v29 = vstv %s28
    %v30 = vand.u32 2147483647, %v29
    %vm31 = vcmp.le.f32.partialorder %v30, 0.7853982
    %vm32 = vcmp.lt.s32.totalorder %v29, 0
    %v33 = vand.u32 %v29, 2139095040
    %v34 = vshrl.u32 %v33, 23
    %v35 = vsub.s32 %v34, 127
    %v36 = vand.u32 2147483647, %v29
    %v37 = vand.u32 %v36, 8388607
    %v38 = vor.u32 %v37, 8388608
    %v39 = vsub.s32 0, %v38
    %v40 = vadd.s32 %v35, 1
    %vm41 = vcmp.gt.s32.totalorder %v40, 0
    %v42 = vsel %vm41, %v40, 0
    %v43 = vshrl.u32 %v42, 5
    %v44 = vand.u32 %v42, 31
    %v45 = vsub.s32 32, %v44
    %v46 = vshrl.u32 683565275, %v45
    %v47 = vshll.u32 683565275, %v44
    %v48 = vshrl.u32 2475754826, %v45
    %v49 = vor.u32 %v47, %v48
    %v50 = vshll.u32 2475754826, %v44
    %v51 = vshrl.u32 2131351028, %v45
    %v52 = vor.u32 %v50, %v51
    %v53 = vshll.u32 2131351028, %v44
    %v54 = vshrl.u32 2102212464, %v45
    %v55 = vor.u32 %v53, %v54
    %v56 = vshll.u32 2102212464, %v44
    %v57 = vshrl.u32 920167782, %v45
    %v58 = vor.u32 %v56, %v57
    %v59 = vshll.u32 920167782, %v44
    %v60 = vshrl.u32 1326507024, %v45
    %v61 = vor.u32 %v59, %v60
    %vm62 = vcmp.lt.s32.totalorder %v43, 1
    %vm63 = vcmp.lt.s32.totalorder %v43, 2
    %vm64 = vcmp.lt.s32.totalorder %v43, 3
    %vm65 = vcmp.lt.s32.totalorder %v43, 4
    %v66 = vsel %vm62, %v46, %v49
    %v67 = vsel %vm65, %v55, 2102212464
    %v68 = vsel %vm64, %v52, %v67
    %v69 = vsel %vm63, %v66, %v68
    %v70 = vsel %vm62, %v49, %v52
    %v71 = vsel %vm65, %v58, 920167782
    %v72 = vsel %vm64, %v55, %v71
    %v73 = vsel %vm63, %v70, %v72
    %v74 = vsel %vm62, %v52, %v55
    %v75 = vsel %vm65, %v61, 1326507024
    %v76 = vsel %vm64, %v58, %v75
    %v77 = vsel %vm63, %v74, %v76
    %v78 = vshll.u32 %v38, 8
    %v79 = vmul.u32.u64.compose %v78, %v77
    %v80 = vextract.low.u32 %v79
    %v81 = vextract.high.u32 %v79
    %v82 = vmul.u32.u64.compose %v78, %v73
    %v83 = vextract.low.u32 %v82
    %v84 = vextract.high.u32 %v82
    %v85 = vmul.u32 %v78, %v69
    %v86 = vadd.s32 %v81, %v83
    %vm87 = vc.u32 %v81, %v83
    %v88 = vadd.s32 %v84, 1
    %v89 = vsel %vm87, %v88, %v84
    %v90 = vadd.s32 %v85, %v89
    %v91 = vadd.s32 %v90, 536870912
    %v92 = vshrl.u32 %v91, 30
    %v93 = vshll.u32 %v92, 30
    %v94 = vsub.s32 %v90, %v93
    %vm95 = vcmp.lt.s32.totalorder %v94, 0
    %v96 = vsub.s32 0, %v94
    %v97 = vsel %vm95, %v96, %v94
    %v98 = vclz %v97
    %v99 = vsub.s32 %v98, 2
    %vm100 = vcmp.gt.s32.totalorder 0, %v99
    %v101 = vsel %vm100, 0, %v99
    %v102 = vsub.s32 32, %v101
    %v103 = vshll.u32 %v94, %v101
    %v104 = vshrl.u32 %v86, %v102
    %v105 = vor.u32 %v103, %v104
    %v106 = vsub.s32 4294967266, %v101
    %v107 = vadd.s32 %v106, 127
    %v108 = vshll.u32 %v107, 23
    %v109 = vor.u32 4788187, %v108
    %v110 = vand.u32 2147483647, %v109
    %v112 = vcvt.s32.f32 %v105
    %v113 = vmul.f32 %v112, %v110
    %v114 = vxor.u32 %v113, 2147483648
    %v115 = vsel %vm32, %v114, %v113
    %v116 = vsub.s32 4, %v92
    %v117 = vsel %vm32, %v116, %v92
    %v118 = vsel %vm31, %v29, %v115
    %v119 = vsel %vm31, 0, %v117
    %v120 = vcosq.f32.pop %v118
    %v121 = vsinq.f32.pop %v118
    %vm122 = vweird.f32 %v29
    %v123 = vand.u32 %v119, 3
    %vm124 = vcmp.lt.s32.totalorder %v123, 2
    %vm125 = vcmp.eq.s32.totalorder %v123, 0
    %v126 = vxor.u32 %v121, 2147483648
    %v127 = vsel %vm125, %v120, %v126
    %vm128 = vcmp.eq.s32.totalorder %v123, 2
    %v129 = vxor.u32 %v120, 2147483648
    %v130 = vsel %vm128, %v129, %v121
    %v131 = vsel %vm124, %v127, %v130
    %v132 = vsel %vm122, nan, %v131
    %v133 = vadd.f32 %v132, 1.0
    %v134 = vmul.f32 %v133, 0.5
    %v135 = vsub.f32 %v15, 1e-05
    %v136 = vmul.f32 %v135, %v134
    %v137 = vadd.f32 %v136, 1e-05
    %v138 = vmul.f32 %v134, -0.36
    %v139 = vadd.f32 %v138, 0.4
    %p140 = scmp.le.s32.totalorder %s13, 10
    %p141 = scmp.ge.f32.partialorder %s27, 100.0
    %s142 = scalar_select %p141, 1, 0
    %v143 = vstv %s142
    %vm144 = vcmp.eq.s32.totalorder %v143, 1
    %v145 = vsel %vm144, 1e-05, %v137
    %s146 = scalar_select %p140, 1, 0
    %v147 = vstv %s146
    %vm148 = vcmp.eq.s32.totalorder %v147, 1
    %v149 = vsel %vm148, %v26, %v145
    %v150 = vsel %vm19, %v149, 0.0
    %v151 = vsel %vm144, 0.4, %v139
    %v152 = vsel %vm21, %v151, %v16
    %v153 = vsel %vm148, %v16, %v152
    %v154 = vsel %vm19, %v153, 0.0
    %vm155 = vcmask 1040384
    %v156 = vsel %vm155, %v150, -inf
    %157 = vmax.xlane.f32.xlu0 %v156
    %v158 = vpop.xlane.xlu0 %157
    %v159 = vmax.f32 %v158, 0.0
    %v160 = vsel %vm148, 0.04, %v151
    %v162 = vrot.slane %v154, 7
    %v165 = vrot.slane %v159, 6
    %v167 = vsel %vm155, %v150, %v162
    %vm168 = vcmask 1041408
    %v169 = vsel %vm168, %v167, %v165
    %vm170 = vcmask 1042432
    %v171 = vsel %vm170, %v169, %v160
    %vm172 = vcmask 1043456
    %v173 = vsel %vm172, %v171, 0.0
    %174 = vst [vmem:[#allocation3] sm:$0xff] %v173
    // Predicated region
    $region10: #{tpu_custom_call.1} parent=1 // pred_check
      _
    $region11: #{tpu_custom_call.1} parent=1 // pred_check_branch
      %176 = sbr.rel (0) target = $region13
    $region12: #{tpu_custom_call.1} parent=1 // pred_region
      %s178 = ssub.s32 128, 128
      %179 = vsyncadd [#allocation4], %s178
      %s181 = sshll.u32 [#allocation3], 4
      %s182 = int_to_ptr.vmem [resolvable:$true] %s181
      %184 = dma.vmem_to_hbm [thread:$0]  %s182, 128, %s2, [#allocation4]
    $region13: #{tpu_custom_call.1} parent=1 // pred_fallthru
      _
    // Predicated region
    $region14: #{tpu_custom_call.1} parent=1 // pred_check
      _
    $region15: #{tpu_custom_call.1} parent=1 // pred_check_branch
      %186 = sbr.rel (0) target = $region17
    $region16: #{tpu_custom_call.1} parent=1 // pred_region
      %187 = dma.done [#allocation4], 128
    $region17: #{tpu_custom_call.1} parent=1 // pred_fallthru
      _
    %188 = vsyncpa [#allocation4], 1

</llo_original>
